<compile_context>
chip_gen: v6e
topology: v6e:2x2x1
jax: 0.10.0
libtpu: 0.0.40
codegen_flags: <defaults>
</compile_context>

<pallas_src>
import functools

import jax
import jax.numpy as jnp
from jax import lax
from jax.experimental import pallas as pl
from jax.experimental.pallas import tpu as pltpu

_LANE = 128
_VMEM_BLOCK_BUDGET = 8 * 1024 * 1024   # per-step working set budget (conservative)
_MAX_PACKED_LANES = 1024               # cap on packed width G*W_out
_MAX_WWT_BYTES = 2 * 1024 * 1024       # cap on the block-diagonal Ww^T


def _align_corners_matrix(out_size: int, in_size: int, dtype=jnp.float32):
    """(out_size, in_size) linear-interp matrix, PyTorch align_corners=True.

    src = dst * (in-1)/(out-1); src = 0 if out == 1.
    """
    if out_size == 1:
        w = jnp.zeros((1, in_size), jnp.float32)
        return w.at[0, 0].set(1.0).astype(dtype)
    dst = jnp.arange(out_size, dtype=jnp.float32)
    src = dst * (in_size - 1) / (out_size - 1)
    i0 = jnp.clip(jnp.floor(src).astype(jnp.int32), 0, in_size - 1)
    i1 = jnp.clip(i0 + 1, 0, in_size - 1)
    frac = src - i0.astype(jnp.float32)
    oh0 = jax.nn.one_hot(i0, in_size, dtype=jnp.float32)
    oh1 = jax.nn.one_hot(i1, in_size, dtype=jnp.float32)
    return (oh0 * (1.0 - frac)[:, None] + oh1 * frac[:, None]).astype(dtype)


def _pick_group(w_in: int, w_out: int, itemsize: int) -> int:
    """Smallest lane-packing factor g with (g*w_out) % 128 == 0 (capped)."""
    g = 1
    while g * w_out <= _MAX_PACKED_LANES:
        if (g * w_out) % _LANE == 0 and (g * w_in) * (g * w_out) * itemsize <= _MAX_WWT_BYTES:
            return g
        g += 1
    return max(1, _LANE // w_out)   # fallback: best-effort lane fill


def _resize_kernel(wh_ref, wwt_ref, x_ref, o_ref):
    # wh_ref : (H_out, H_in)            f32       (resident across grid steps)
    # wwt_ref: (G*W_in, G*W_out)        x.dtype   (block-diagonal Ww^T, resident)
    # x_ref  : (TB, H_in, G*W_in)       x.dtype
    # o_ref  : (TB, H_out, G*W_out)     x.dtype
    tb, h_in, wp_in = x_ref.shape
    h_out = wh_ref.shape[0]
    wp_out = wwt_ref.shape[1]

    # --- W-resize: one long-M MXU matmul over the flattened (TB*H_in) rows. ---
    xf = x_ref[...].reshape(tb * h_in, wp_in)
    tmp = jnp.dot(xf, wwt_ref[...], preferred_element_type=jnp.float32)
    tmp = tmp.reshape(tb, h_in, wp_out)

    # --- H-resize: batched matmul over the TB axis (f32 accumulate). ---
    wh_b = jnp.broadcast_to(wh_ref[...], (tb, h_out, h_in))   # hoisted, once per step
    out = lax.dot_general(
        wh_b, tmp,
        dimension_numbers=(((2,), (1,)), ((0,), (0,))),
        preferred_element_type=jnp.float32)                   # (TB, H_out, G*W_out)

    o_ref[...] = out.astype(o_ref.dtype)


@functools.partial(jax.jit, static_argnames=("vel_resize", "ndims"))
def resize_transform(x, *, vel_resize: float, ndims: int = 2):
    """Pallas equivalent of ResizeTransform(vel_resize, ndims).forward(x).

    x: (N, C, H, W)  ->  (N, C, floor(H*factor), floor(W*factor)),
    factor = 1 / vel_resize.
    """
    factor = 1.0 / vel_resize
    if factor == 1.0:
        return x
    if ndims != 2:
        # TODO(synk): trilinear (ndims=3) / linear (ndims=1) paths not implemented.
        raise NotImplementedError("Only ndims=2 (bilinear) is implemented.")

    n, c, h_in, w_in = x.shape
    # Same product + truncation PyTorch uses for scale_factor (floor for >0).
    h_out = int(h_in * factor)
    w_out = int(w_in * factor)

    dtype = x.dtype
    itemsize = jnp.dtype(dtype).itemsize

    # Lane-pack G images along the width axis -> output last dim multiple of 128.
    g = _pick_group(w_in, w_out, itemsize)
    wp_in, wp_out = g * w_in, g * w_out

    # Interp matrices.  Wh stays f32 (feeds the f32-accumulated 2nd matmul);
    # block-diagonal Ww^T is kept in x.dtype so bf16 inputs stay bf16 into MXU.
    wh = _align_corners_matrix(h_out, h_in, jnp.float32)
    wwt = _align_corners_matrix(w_out, w_in, jnp.float32).T          # (W_in, W_out)
    wwt_bd = jnp.kron(jnp.eye(g, dtype=jnp.float32), wwt).astype(dtype)

    nc = n * c
    bg = -(-nc // g)                                   # packed groups

    # TB packed groups per step: fill a conservative VMEM budget (including the
    # double-buffered in/out blocks, f32 intermediates and broadcast Wh), but
    # keep the grid length >= 2 when possible so both TCs get work on v7x.
    per_group = (2 * (h_in * wp_in + h_out * wp_out) * itemsize        # dbl-buffered I/O
                 + (h_in * wp_out + h_out * wp_out + h_out * h_in) * 4)  # f32 temporaries
    tb = max(1, _VMEM_BLOCK_BUDGET // per_group)
    tb = min(tb, max(1, -(-bg // 2)))
    steps = -(-bg // tb)
    bg_pad = steps * tb

    # Pack: (N*C, H, W) -> (Bg, H, G*W), zero-padding unused slots.
    x_flat = x.reshape(nc, h_in, w_in)
    pad = bg_pad * g - nc
    if pad:
        x_flat = jnp.pad(x_flat, ((0, pad), (0, 0), (0, 0)))
    if g > 1:
        x_packed = (x_flat.reshape(bg_pad, g, h_in, w_in)
                          .transpose(0, 2, 1, 3)
                          .reshape(bg_pad, h_in, wp_in))
    else:
        x_packed = x_flat

    flops = 2 * bg_pad * h_in * wp_in * wp_out + 2 * bg_pad * h_out * h_in * wp_out
    bytes_accessed = ((bg_pad * h_in * wp_in + bg_pad * h_out * wp_out) * itemsize
                      + wh.size * 4 + wwt_bd.size * itemsize)

    out_packed = pl.pallas_call(
        _resize_kernel,
        out_shape=jax.ShapeDtypeStruct((bg_pad, h_out, wp_out), dtype),
        grid_spec=pltpu.PrefetchScalarGridSpec(
            num_scalar_prefetch=0,
            grid=(steps,),
            in_specs=[
                pl.BlockSpec((h_out, h_in), lambda i: (0, 0)),       # Wh (resident)
                pl.BlockSpec((wp_in, wp_out), lambda i: (0, 0)),     # Ww^T blkdiag
                pl.BlockSpec((tb, h_in, wp_in), lambda i: (i, 0, 0)),
            ],
            out_specs=pl.BlockSpec((tb, h_out, wp_out), lambda i: (i, 0, 0)),
        ),
        compiler_params=pltpu.CompilerParams(
            dimension_semantics=("parallel",),
            vmem_limit_bytes=32 * 1024 * 1024),
        cost_estimate=pl.CostEstimate(
            flops=flops, transcendentals=0, bytes_accessed=bytes_accessed),
    )(wh, wwt_bd, x_packed)

    # Unpack lanes, drop padding, restore NCHW.
    if g > 1:
        out_flat = (out_packed.reshape(bg_pad, h_out, g, w_out)
                              .transpose(0, 2, 1, 3)
                              .reshape(bg_pad * g, h_out, w_out))
    else:
        out_flat = out_packed
    return out_flat[:nc].reshape(n, c, h_out, w_out)


def _ref_bilinear_align_corners(x, h_out, w_out):
    """Independent gather-based align_corners=True bilinear resize (NCHW)."""
    _, _, h_in, w_in = x.shape

    def src(out_size, in_size):
        if out_size == 1:
            return jnp.zeros((1,), jnp.float32)
        return jnp.arange(out_size, dtype=jnp.float32) * (in_size - 1) / (out_size - 1)

    sy, sx = src(h_out, h_in), src(w_out, w_in)
    y0 = jnp.clip(jnp.floor(sy).astype(jnp.int32), 0, h_in - 1)
    x0 = jnp.clip(jnp.floor(sx).astype(jnp.int32), 0, w_in - 1)
    y1 = jnp.clip(y0 + 1, 0, h_in - 1)
    x1 = jnp.clip(x0 + 1, 0, w_in - 1)
    fy = (sy - y0.astype(jnp.float32))[None, None, :, None]
    fx = (sx - x0.astype(jnp.float32))[None, None, None, :]

    def gather(yi, xi):
        return x[:, :, yi[:, None], xi[None, :]]

    return (gather(y0, x0) * (1 - fy) * (1 - fx)
            + gather(y0, x1) * (1 - fy) * fx
            + gather(y1, x0) * fy * (1 - fx)
            + gather(y1, x1) * fy * fx)


if __name__ == "__main__":
    key = jax.random.PRNGKey(0)
    # Vector field: batch=2, channels=4, 16x16 spatial.
    x = jax.random.normal(key, (2, 4, 16, 16), dtype=jnp.float32)

    # Upsample: vel_resize = 0.5 -> factor = 2.0 (16x16 -> 32x32).
    out_up = jax.block_until_ready(resize_transform(x, vel_resize=0.5))
    ref_up = _ref_bilinear_align_corners(x, 32, 32)
    assert out_up.shape == (2, 4, 32, 32)
    assert jnp.allclose(out_up, ref_up, atol=1e-4, rtol=1e-4), \
        float(jnp.max(jnp.abs(out_up - ref_up)))

    # Downsample: vel_resize = 2.0 -> factor = 0.5 (16x16 -> 8x8); exercises
    # the lane-packing / padding path (G = 16).
    out_dn = jax.block_until_ready(resize_transform(x, vel_resize=2.0))
    ref_dn = _ref_bilinear_align_corners(x, 8, 8)
    assert out_dn.shape == (2, 4, 8, 8)
    assert jnp.allclose(out_dn, ref_dn, atol=1e-4, rtol=1e-4), \
        float(jnp.max(jnp.abs(out_dn - ref_dn)))

    print("KERNEL_OK")
</pallas_src>

<mosaic_0001>
module attributes {stable_mosaic.version = 11 : i64} {
  func.func @_resize_kernel(%arg0: i32, %arg1: memref<32x16xf32, #tpu.memory_space<vmem>>, %arg2: memref<64x128xf32, #tpu.memory_space<vmem>>, %arg3: memref<1x16x64xf32, #tpu.memory_space<vmem>>, %arg4: memref<1x32x128xf32, #tpu.memory_space<vmem>>) attributes {dimension_semantics = [#tpu.dimension_semantics<parallel>], iteration_bounds = array<i64: 2>, scalar_prefetch = 0 : i64, scratch_operands = 0 : i64, tpu.core_type = #tpu.core_type<tc>, window_params = [{pipeline_mode = #tpu.pipeline_mode<synchronous>, transform_indices = @transform_0, window_bounds = array<i64: 32, 16>}, {pipeline_mode = #tpu.pipeline_mode<synchronous>, transform_indices = @transform_1, window_bounds = array<i64: 64, 128>}, {transform_indices = @transform_2, window_bounds = array<i64: 1, 16, 64>}, {transform_indices = @transform_3, window_bounds = array<i64: 1, 32, 128>}]} {
    %c0 = arith.constant 0 : index
    %c0_0 = arith.constant 0 : index
    %c0_1 = arith.constant 0 : index
    %0 = vector.load %arg3[%c0, %c0_0, %c0_1] : memref<1x16x64xf32, #tpu.memory_space<vmem>>, vector<1x16x64xf32>
    %1 = vector.shape_cast %0 : vector<1x16x64xf32> to vector<16x64xf32>
    %c0_2 = arith.constant 0 : index
    %c0_3 = arith.constant 0 : index
    %2 = vector.load %arg2[%c0_2, %c0_3] : memref<64x128xf32, #tpu.memory_space<vmem>>, vector<64x128xf32>
    %cst = arith.constant dense<0.000000e+00> : vector<16x128xf32>
    %3 = tpu.matmul %1, %2, %cst {dimension_numbers = #tpu.dot_dimension_numbers<[1], [0], [0], [1], [0, 0, 1, 1], [], []>} : vector<16x64xf32>, vector<64x128xf32>, vector<16x128xf32> -> vector<16x128xf32>
    %4 = vector.shape_cast %3 : vector<16x128xf32> to vector<1x16x128xf32>
    %c0_4 = arith.constant 0 : index
    %c0_5 = arith.constant 0 : index
    %5 = vector.load %arg1[%c0_4, %c0_5] : memref<32x16xf32, #tpu.memory_space<vmem>>, vector<32x16xf32>
    %6 = vector.shape_cast %5 : vector<32x16xf32> to vector<1x32x16xf32>
    %cst_6 = arith.constant dense<0.000000e+00> : vector<1x32x128xf32>
    %7 = tpu.matmul %6, %4, %cst_6 {dimension_numbers = #tpu.dot_dimension_numbers<[2], [1], [1], [2], [0, 0, 0, 1, 1, 2], [0], [0]>} : vector<1x32x16xf32>, vector<1x16x128xf32>, vector<1x32x128xf32> -> vector<1x32x128xf32>
    %c0_7 = arith.constant 0 : index
    %c0_8 = arith.constant 0 : index
    %c0_9 = arith.constant 0 : index
    %8 = vector.load %arg4[%c0_7, %c0_8, %c0_9] : memref<1x32x128xf32, #tpu.memory_space<vmem>>, vector<1x32x128xf32>
    tpu.vector_store %arg4[%c0_7, %c0_8, %c0_9], %7 {strides = array<i32>} : memref<1x32x128xf32, #tpu.memory_space<vmem>>, vector<1x32x128xf32>,
    return
  }
  func.func @transform_0(%arg0: i32) -> (i32, i32) {
    %c0_i32 = arith.constant 0 : i32
    %c0_i32_0 = arith.constant 0 : i32
    %c0_i32_1 = arith.constant 0 : i32
    return %c0_i32, %c0_i32_0 : i32, i32
  }
  func.func @transform_1(%arg0: i32) -> (i32, i32) {
    %c0_i32 = arith.constant 0 : i32
    %c0_i32_0 = arith.constant 0 : i32
    %c0_i32_1 = arith.constant 0 : i32
    return %c0_i32, %c0_i32_0 : i32, i32
  }
  func.func @transform_2(%arg0: i32) -> (i32, i32, i32) {
    %c0_i32 = arith.constant 0 : i32
    %c0_i32_0 = arith.constant 0 : i32
    %c0_i32_1 = arith.constant 0 : i32
    return %arg0, %c0_i32, %c0_i32_0 : i32, i32, i32
  }
  func.func @transform_3(%arg0: i32) -> (i32, i32, i32) {
    %c0_i32 = arith.constant 0 : i32
    %c0_i32_0 = arith.constant 0 : i32
    %c0_i32_1 = arith.constant 0 : i32
    return %arg0, %c0_i32, %c0_i32_0 : i32, i32, i32
  }
}

</mosaic_0001>

<llo_original>
// kernel: resize_transform.1
$region0: #{resize_transform.1}
  #allocation0 [shape = 'u32[]', space=smem, size = 0x4, offset = 0x4, fixed_abs, tag = 'smem constant byte address 0x4 - core index']
  #allocation1 [shape = 'u32[144,128]{1,0:T(1,128)}', space=vmem, size = 0x12000, scoped, tag = 'internal scratch']
  %s0 = inlined_call_operand.vmem [shape: f32[32,16], index: 0, kind: input, shape index: {}]
  %s1 = inlined_call_operand.vmem [shape: f32[64,128], index: 1, kind: input, shape index: {}]
  %s2 = inlined_call_operand.vmem [shape: f32[2,16,64], index: 2, kind: input, shape index: {}]
  %s3 = inlined_call_operand.vmem [shape: f32[2,32,128], index: 3, kind: output, shape index: {}]
  %s4 = sld [smem:[#allocation0]]
  $region45: #{resize_transform.1} parent=0
    _
  %s6 = ssub.s32 1, %s4
  %s7 = scalar_select 0, %s6, %s4
  loop: start=0, step=1, limit=4
  $region2: #{resize_transform.1} parent=0 // loop_pre_header
    _
  $region3: #{resize_transform.1} parent=0 // loop_header
    %s9 = sphi 0, %s13
    %p10 = scmp.ge.s32.totalorder %s9, 4
    %s17 = sphi 0, %s17
    %s19 = sphi 0, %s17
    %s20 = sphi 0, %s19
    %s34 = sphi 0, %s20
    %s38 = sphi 0, %s38
    %s40 = sphi 0, %s38
    %s41 = sphi 0, %s40
    %s55 = sphi 0, %s41
    %s61 = sphi 0, %s63
    %s64 = sphi 0, %s61
    %s65 = sphi 0, %s64
    %s81 = sphi 0, %s65
    %s87 = sphi 0, %s89
    %s90 = sphi 0, %s87
    %s91 = sphi 0, %s90
    %s107 = sphi 0, %s91
  $region4: #{resize_transform.1} parent=0 // loop_header_branch
    %12 = sbr.rel (%p10) target = $region8
  $region5: #{resize_transform.1} parent=0 // loop_body
    %s14 = ssub.s32 %s9, 1
    %s15 = ssub.s32 %s9, 2
    %s16 = sadd.s32 %s9, 1
    %s18 = sadd.s32 %s17, 1
    %p21 = scmp.eq.s32.totalorder %s9, 1
    %p22 = scmp.ne.s32.totalorder %s17, %s19
    %p23 = scmp.eq.s32.totalorder %s9, 0
    %p24 = por %p22, %p23
    %p25 = scmp.ne.s32.totalorder %s17, %s19
    %p26 = scmp.eq.s32.totalorder %s14, 1
    %p27 = por %p25, %p26
    %p28 = scmp.ne.s32.totalorder %s19, %s20
    %p29 = scmp.eq.s32.totalorder %s14, 0
    %p30 = por %p28, %p29
    %p31 = scmp.ne.s32.totalorder %s19, %s20
    %p32 = scmp.eq.s32.totalorder %s15, 1
    %p33 = por %p31, %p32
    %p35 = scmp.ne.s32.totalorder %s20, %s34
    %p36 = scmp.eq.s32.totalorder %s15, 0
    %p37 = por %p35, %p36
    %s39 = sadd.s32 %s38, 1
    %p42 = scmp.eq.s32.totalorder %s9, 1
    %p43 = scmp.ne.s32.totalorder %s38, %s40
    %p44 = scmp.eq.s32.totalorder %s9, 0
    %p45 = por %p43, %p44
    %p46 = scmp.ne.s32.totalorder %s38, %s40
    %p47 = scmp.eq.s32.totalorder %s14, 1
    %p48 = por %p46, %p47
    %p49 = scmp.ne.s32.totalorder %s40, %s41
    %p50 = scmp.eq.s32.totalorder %s14, 0
    %p51 = por %p49, %p50
    %p52 = scmp.ne.s32.totalorder %s40, %s41
    %p53 = scmp.eq.s32.totalorder %s15, 1
    %p54 = por %p52, %p53
    %p56 = scmp.ne.s32.totalorder %s41, %s55
    %p57 = scmp.eq.s32.totalorder %s15, 0
    %p58 = por %p56, %p57
    %s59 = ssub.s32 %s9, %s16
    %p60 = scmp.eq.s32.totalorder %s59, 0
    %s62 = sadd.s32 %s61, 1
    %s63 = scalar_select %p60, %s61, %s62
    %p66 = pneg %p60
    %p67 = scmp.eq.s32.totalorder %s9, 1
    %p68 = por %p66, %p67
    %p69 = scmp.ne.s32.totalorder %s61, %s64
    %p70 = scmp.eq.s32.totalorder %s9, 0
    %p71 = por %p69, %p70
    %p72 = scmp.ne.s32.totalorder %s61, %s64
    %p73 = scmp.eq.s32.totalorder %s14, 1
    %p74 = por %p72, %p73
    %p75 = scmp.ne.s32.totalorder %s64, %s65
    %p76 = scmp.eq.s32.totalorder %s14, 0
    %p77 = por %p75, %p76
    %p78 = scmp.ne.s32.totalorder %s64, %s65
    %p79 = scmp.eq.s32.totalorder %s15, 1
    %p80 = por %p78, %p79
    %p82 = scmp.ne.s32.totalorder %s65, %s81
    %p83 = scmp.eq.s32.totalorder %s15, 0
    %p84 = por %p82, %p83
    %s85 = ssub.s32 %s9, %s16
    %p86 = scmp.eq.s32.totalorder %s85, 0
    %s88 = sadd.s32 %s87, 1
    %s89 = scalar_select %p86, %s87, %s88
    %p92 = pneg %p86
    %p93 = scmp.eq.s32.totalorder %s9, 1
    %p94 = por %p92, %p93
    %p95 = scmp.ne.s32.totalorder %s87, %s90
    %p96 = scmp.eq.s32.totalorder %s9, 0
    %p97 = por %p95, %p96
    %p98 = scmp.ne.s32.totalorder %s87, %s90
    %p99 = scmp.eq.s32.totalorder %s14, 1
    %p100 = por %p98, %p99
    %p101 = scmp.ne.s32.totalorder %s90, %s91
    %p102 = scmp.eq.s32.totalorder %s14, 0
    %p103 = por %p101, %p102
    %p104 = scmp.ne.s32.totalorder %s90, %s91
    %p105 = scmp.eq.s32.totalorder %s15, 1
    %p106 = por %p104, %p105
    %p108 = scmp.ne.s32.totalorder %s91, %s107
    %p109 = scmp.eq.s32.totalorder %s15, 0
    %p110 = por %p108, %p109
    %p111 = scmp.le.s32.totalorder 1, %s9
    %p112 = scmp.lt.s32.totalorder %s9, 3
    %p113 = pnand %p111, %p112
    %p114 = pneg %p113
    // Predicated region
    $region9: #{resize_transform.1} parent=5 // pred_check
      _
    $region10: #{resize_transform.1} parent=5 // pred_check_branch
      %116 = sbr.rel (%p113) target = $region12
    $region11: #{resize_transform.1} parent=5 // pred_region
      %s117 = ssub.s32 %s9, 1
      // Predicated region
      $region13: #{resize_transform.1} parent=11 // pred_check
        %p118 = pneg %p30
      $region14: #{resize_transform.1} parent=11 // pred_check_branch
        %120 = sbr.rel (%p118) target = $region16
      $region15: #{resize_transform.1} parent=11 // pred_region
        _
      $region16: #{resize_transform.1} parent=11 // pred_fallthru
        _
      // Predicated region
      $region17: #{resize_transform.1} parent=11 // pred_check
        %p121 = pneg %p51
      $region18: #{resize_transform.1} parent=11 // pred_check_branch
        %123 = sbr.rel (%p121) target = $region20
      $region19: #{resize_transform.1} parent=11 // pred_region
        _
      $region20: #{resize_transform.1} parent=11 // pred_fallthru
        _
    $region12: #{resize_transform.1} parent=5 // pred_fallthru
      _
    %p124 = scmp.lt.s32.totalorder %s9, 2
    // Predicated region
    $region21: #{resize_transform.1} parent=5 // pred_check
      %p125 = pneg %p124
    $region22: #{resize_transform.1} parent=5 // pred_check_branch
      %127 = sbr.rel (%p125) target = $region24
    $region23: #{resize_transform.1} parent=5 // pred_region
      // Predicated region
      $region25: #{resize_transform.1} parent=23 // pred_check
        %p128 = pneg %p71
      $region26: #{resize_transform.1} parent=23 // pred_check_branch
        %130 = sbr.rel (%p128) target = $region28
      $region27: #{resize_transform.1} parent=23 // pred_region
        %p131 = scmp.lt.s32.totalorder %s9, 1
        %s132 = scalar_select %p131, %s9, 1
        %s133 = smul.addr %s132, 2
        %s134 = smul.addr %s133, 8
        %s135 = scalar_lea.vmem %s2, %s134
      $region28: #{resize_transform.1} parent=23 // pred_fallthru
        _
    $region24: #{resize_transform.1} parent=5 // pred_fallthru
      _
    %p136 = scmp.le.s32.totalorder 1, %s9
    %p137 = scmp.lt.s32.totalorder %s9, 3
    %p138 = pnand %p136, %p137
    %p139 = pneg %p138
    // Predicated region
    $region29: #{resize_transform.1} parent=5 // pred_check
      _
    $region30: #{resize_transform.1} parent=5 // pred_check_branch
      %141 = sbr.rel (%p138) target = $region32
    $region31: #{resize_transform.1} parent=5 // pred_region
      %s142 = ssub.s32 %s9, 1
      %p143 = pneg %p30
      %p144 = pneg %p27
      %p145 = pneg %p51
      %p146 = pneg %p48
      %p147 = scmp.lt.s32.totalorder %s14, 1
      %s148 = scalar_select %p147, %s14, 1
      %s149 = smul.addr %s148, 2
      %s150 = smul.addr %s149, 8
      %s151 = scalar_lea.vmem %s2, %s150
      %p152 = pneg %p77
      %p153 = pneg %p74
      %p154 = pneg %p103
      %p155 = pneg %p100
      %p156 = scmp.lt.s32.totalorder %s14, 1
      %s157 = scalar_select %p156, %s14, 1
      %s158 = smul.addr %s157, 4
      %s159 = smul.addr %s158, 8
      %s160 = scalar_lea.vmem %s3, %s159
      %p161 = scmp.lt.s32.totalorder %s14, 1
      %s162 = scalar_select %p161, %s14, 1
      %s163 = smul.addr %s162, 2
      %s164 = smul.addr %s163, 8
      %s165 = scalar_lea.vmem %s2, %s164
      %p166 = scmp.lt.s32.totalorder %s14, 1
      %s167 = scalar_select %p166, %s14, 1
      %s168 = smul.addr %s167, 4
      %s169 = smul.addr %s168, 8
      %s170 = scalar_lea.vmem %s3, %s169
      %v171 = vld [vmem:[%s165] sm:$0xff]
      %v172 = vld [vmem:[%s165 + $0x8] sm:$0xff]
      %v173 = vld [vmem:[%s1] sm:$0xff]
      %v174 = vld [vmem:[%s1 + $0x8] sm:$0xff]
      %v175 = vld [vmem:[%s1 + $0x10] sm:$0xff]
      %v176 = vld [vmem:[%s1 + $0x18] sm:$0xff]
      %v177 = vld [vmem:[%s1 + $0x20] sm:$0xff]
      %v178 = vld [vmem:[%s1 + $0x28] sm:$0xff]
      %v179 = vld [vmem:[%s1 + $0x30] sm:$0xff]
      %v180 = vld [vmem:[%s1 + $0x38] sm:$0xff]
      %vm181 = vcmask 523264
      %v183 = vsel %vm181, %v171, 0
      %v186 = vsel %vm181, %v172, 0
      %188 = vmatprep.subr.mxu0 0.0
      %189 = vmatpush1.msra.mxu0 0.0
      %190 = vmatprep.subr.mxu0 0.0
      %191 = vmatpush1.msra.mxu0 0.0
      %192 = vmatprep.subr.mxu0 0.0
      %193 = vmatpush1.msra.mxu0 0.0
      %194 = vmatprep.subr.mxu0 0.0
      %195 = vmatpush1.msra.mxu0 0.0
      %196 = vmatprep.subr.mxu0 0.0
      %197 = vmatpush1.msra.mxu0 0.0
      %198 = vmatprep.subr.mxu0 0.0
      %199 = vmatpush1.msra.mxu0 0.0
      %200 = vmatprep.subr.mxu0 0.0
      %201 = vmatpush1.msra.mxu0 0.0
      %202 = vmatprep.subr.mxu0 0.0
      %203 = vmatpush1.msra.mxu0 0.0
      %204 = vmatprep.subr.mxu0 0.0
      %205 = vmatpush1.msra.mxu0 %v180
      %206 = vmatprep.subr.mxu0 0.0
      %207 = vmatpush1.msra.mxu0 %v179
      %208 = vmatprep.subr.mxu0 0.0
      %209 = vmatpush1.msra.mxu0 %v178
      %210 = vmatprep.subr.mxu0 0.0
      %211 = vmatpush1.msra.mxu0 %v177
      %212 = vmatprep.subr.mxu0 0.0
      %213 = vmatpush1.msra.mxu0 %v176
      %214 = vmatprep.subr.mxu0 0.0
      %215 = vmatpush1.msra.mxu0 %v175
      %216 = vmatprep.subr.mxu0 0.0
      %217 = vmatpush1.msra.mxu0 %v174
      %218 = vmatprep.subr.mxu0 0.0
      %219 = vmatpush1.msra.mxu0 %v173
      %220 = vmatprep.subr.mxu0 0.0
      %221 = vmatpush2.msra.mxu0 0.0
      %222 = vmatprep.subr.mxu0 0.0
      %223 = vmatpush2.msra.mxu0 0.0
      %224 = vmatprep.subr.mxu0 0.0
      %225 = vmatpush2.msra.mxu0 0.0
      %226 = vmatprep.subr.mxu0 0.0
      %227 = vmatpush2.msra.mxu0 0.0
      %228 = vmatprep.subr.mxu0 0.0
      %229 = vmatpush2.msra.mxu0 0.0
      %230 = vmatprep.subr.mxu0 0.0
      %231 = vmatpush2.msra.mxu0 0.0
      %232 = vmatprep.subr.mxu0 0.0
      %233 = vmatpush2.msra.mxu0 0.0
      %234 = vmatprep.subr.mxu0 0.0
      %235 = vmatpush2.msra.mxu0 0.0
      %236 = vmatprep.subr.mxu0 0.0
      %237 = vmatpush2.msra.mxu0 0.0
      %238 = vmatprep.subr.mxu0 0.0
      %239 = vmatpush2.msra.mxu0 0.0
      %240 = vmatprep.subr.mxu0 0.0
      %241 = vmatpush2.msra.mxu0 0.0
      %242 = vmatprep.subr.mxu0 0.0
      %243 = vmatpush2.msra.mxu0 0.0
      %244 = vmatprep.subr.mxu0 0.0
      %245 = vmatpush2.msra.mxu0 0.0
      %246 = vmatprep.subr.mxu0 0.0
      %247 = vmatpush2.msra.mxu0 0.0
      %248 = vmatprep.subr.mxu0 0.0
      %249 = vmatpush2.msra.mxu0 0.0
      %250 = vmatprep.subr.mxu0 0.0
      %251 = vmatpush2.msra.mxu0 0.0
      %252 = vmatprep.mubr.f32.mxu0 0.0
      %253 = vmatmul.mubr.f32.gmra.mxu0 %v183
      %v254 = vpop.f32.mrf.mxu0
      %v255 = vadd.f32 0.0, %v254
      %v256 = vpop.f32.mrf.mxu0
      %257 = vmatprep.mubr.f32.mxu0 0.0
      %258 = vmatmul.mubr.f32.gmra.mxu0 %v186
      %v259 = vpop.f32.mrf.mxu0
      %v260 = vadd.f32 0.0, %v259
      %v261 = vpop.f32.mrf.mxu0
      %262 = vdwg.mxu0
      %v263 = vld [vmem:[%s0] sm:$0xff]
      %v264 = vld [vmem:[%s0 + $0x8] sm:$0xff]
      %v265 = vld [vmem:[%s0 + $0x10] sm:$0xff]
      %v266 = vld [vmem:[%s0 + $0x18] sm:$0xff]
      %vm267 = vcmask 130048
      %v269 = vsel %vm267, %v263, 0
      %v272 = vsel %vm267, %v264, 0
      %v275 = vsel %vm267, %v265, 0
      %v278 = vsel %vm267, %v266, 0
      %280 = vmatprep.subr.mxu0 0.0
      %281 = vmatpush1.msra.mxu0 0.0
      %282 = vmatprep.subr.mxu0 0.0
      %283 = vmatpush1.msra.mxu0 0.0
      %284 = vmatprep.subr.mxu0 0.0
      %285 = vmatpush1.msra.mxu0 0.0
      %286 = vmatprep.subr.mxu0 0.0
      %287 = vmatpush1.msra.mxu0 0.0
      %288 = vmatprep.subr.mxu0 0.0
      %289 = vmatpush1.msra.mxu0 0.0
      %290 = vmatprep.subr.mxu0 0.0
      %291 = vmatpush1.msra.mxu0 0.0
      %292 = vmatprep.subr.mxu0 0.0
      %293 = vmatpush1.msra.mxu0 0.0
      %294 = vmatprep.subr.mxu0 0.0
      %295 = vmatpush1.msra.mxu0 0.0
      %296 = vmatprep.subr.mxu0 0.0
      %297 = vmatpush1.msra.mxu0 0.0
      %298 = vmatprep.subr.mxu0 0.0
      %299 = vmatpush1.msra.mxu0 0.0
      %300 = vmatprep.subr.mxu0 0.0
      %301 = vmatpush1.msra.mxu0 0.0
      %302 = vmatprep.subr.mxu0 0.0
      %303 = vmatpush1.msra.mxu0 0.0
      %304 = vmatprep.subr.mxu0 0.0
      %305 = vmatpush1.msra.mxu0 0.0
      %306 = vmatprep.subr.mxu0 0.0
      %307 = vmatpush1.msra.mxu0 0.0
      %308 = vmatprep.subr.mxu0 0.0
      %309 = vmatpush1.msra.mxu0 %v260
      %310 = vmatprep.subr.mxu0 0.0
      %311 = vmatpush1.msra.mxu0 %v255
      %312 = vmatprep.subr.mxu0 0.0
      %313 = vmatpush2.msra.mxu0 0.0
      %314 = vmatprep.subr.mxu0 0.0
      %315 = vmatpush2.msra.mxu0 0.0
      %316 = vmatprep.subr.mxu0 0.0
      %317 = vmatpush2.msra.mxu0 0.0
      %318 = vmatprep.subr.mxu0 0.0
      %319 = vmatpush2.msra.mxu0 0.0
      %320 = vmatprep.subr.mxu0 0.0
      %321 = vmatpush2.msra.mxu0 0.0
      %322 = vmatprep.subr.mxu0 0.0
      %323 = vmatpush2.msra.mxu0 0.0
      %324 = vmatprep.subr.mxu0 0.0
      %325 = vmatpush2.msra.mxu0 0.0
      %326 = vmatprep.subr.mxu0 0.0
      %327 = vmatpush2.msra.mxu0 0.0
      %328 = vmatprep.subr.mxu0 0.0
      %329 = vmatpush2.msra.mxu0 0.0
      %330 = vmatprep.subr.mxu0 0.0
      %331 = vmatpush2.msra.mxu0 0.0
      %332 = vmatprep.subr.mxu0 0.0
      %333 = vmatpush2.msra.mxu0 0.0
      %334 = vmatprep.subr.mxu0 0.0
      %335 = vmatpush2.msra.mxu0 0.0
      %336 = vmatprep.subr.mxu0 0.0
      %337 = vmatpush2.msra.mxu0 0.0
      %338 = vmatprep.subr.mxu0 0.0
      %339 = vmatpush2.msra.mxu0 0.0
      %340 = vmatprep.subr.mxu0 0.0
      %341 = vmatpush2.msra.mxu0 0.0
      %342 = vmatprep.subr.mxu0 0.0
      %343 = vmatpush2.msra.mxu0 0.0
      %344 = vmatprep.mubr.f32.mxu0 0.0
      %345 = vmatmul.mubr.f32.gmra.mxu0 %v269
      %v346 = vpop.f32.mrf.mxu0
      %v347 = vadd.f32 0.0, %v346
      %v348 = vpop.f32.mrf.mxu0
      %349 = vmatprep.mubr.f32.mxu0 0.0
      %350 = vmatmul.mubr.f32.gmra.mxu0 %v272
      %v351 = vpop.f32.mrf.mxu0
      %v352 = vadd.f32 0.0, %v351
      %v353 = vpop.f32.mrf.mxu0
      %354 = vmatprep.mubr.f32.mxu0 0.0
      %355 = vmatmul.mubr.f32.gmra.mxu0 %v275
      %v356 = vpop.f32.mrf.mxu0
      %v357 = vadd.f32 0.0, %v356
      %v358 = vpop.f32.mrf.mxu0
      %359 = vmatprep.mubr.f32.mxu0 0.0
      %360 = vmatmul.mubr.f32.gmra.mxu0 %v278
      %v361 = vpop.f32.mrf.mxu0
      %v362 = vadd.f32 0.0, %v361
      %v363 = vpop.f32.mrf.mxu0
      %364 = vdwg.mxu0
      %365 = vst [vmem:[%s170] sm:$0xff] %v347
      %366 = vst [vmem:[%s170 + $0x8] sm:$0xff] %v352
      %367 = vst [vmem:[%s170 + $0x10] sm:$0xff] %v357
      %368 = vst [vmem:[%s170 + $0x18] sm:$0xff] %v362
      %p369 = scmp.lt.s32.totalorder %s14, 1
      %s370 = scalar_select %p369, %s14, 1
      %s371 = smul.addr %s370, 4
      %s372 = smul.addr %s371, 8
      %s373 = scalar_lea.vmem %s3, %s372
      // Predicated region
      $region33: #{resize_transform.1} parent=31 // pred_check
        %p374 = pneg %p100
      $region34: #{resize_transform.1} parent=31 // pred_check_branch
        %376 = sbr.rel (%p374) target = $region36
      $region35: #{resize_transform.1} parent=31 // pred_region
        _
      $region36: #{resize_transform.1} parent=31 // pred_fallthru
        _
    $region32: #{resize_transform.1} parent=5 // pred_fallthru
      _
    %p377 = scmp.le.s32.totalorder 2, %s9
    // Predicated region
    $region37: #{resize_transform.1} parent=5 // pred_check
      %p378 = pneg %p377
    $region38: #{resize_transform.1} parent=5 // pred_check_branch
      %380 = sbr.rel (%p378) target = $region40
    $region39: #{resize_transform.1} parent=5 // pred_region
      %s381 = ssub.s32 %s9, 2
      // Predicated region
      $region41: #{resize_transform.1} parent=39 // pred_check
        %p382 = pneg %p106
      $region42: #{resize_transform.1} parent=39 // pred_check_branch
        %384 = sbr.rel (%p382) target = $region44
      $region43: #{resize_transform.1} parent=39 // pred_region
        %p385 = scmp.lt.s32.totalorder %s15, 1
        %s386 = scalar_select %p385, %s15, 1
        %s387 = smul.addr %s386, 4
        %s388 = smul.addr %s387, 8
        %s389 = scalar_lea.vmem %s3, %s388
      $region44: #{resize_transform.1} parent=39 // pred_fallthru
        _
    $region40: #{resize_transform.1} parent=5 // pred_fallthru
      _
  $region6: #{resize_transform.1} parent=0 // loop_footer
    %s13 = sadd.s32 1, %s9
  $region7: #{resize_transform.1} parent=0 // loop_footer_branch
    %8 = sbr.rel target = $region3
  $region8: #{resize_transform.1} parent=0 // loop_exit
    _

</llo_original>
